<compile_context>
chip_gen: v7x
topology: tpu7x:2x2x1
jax: 0.10.0
libtpu: 0.0.40
codegen_flags: <defaults>
</compile_context>

<pallas_src>
import math

import jax
import jax.numpy as jnp
from jax import lax
from jax.experimental import pallas as pl
from jax.experimental.pallas import tpu as pltpu


def make_pilots_kernel(Nc, M, sigma):
    """Builds the Pallas kernel body with compile-time constants closed over."""

    inv_NcM = 1.0 / (Nc * M)
    sig = float(sigma)

    def kernel(x_ref, wp_ref, bp_ref, wf_ref, bf_ref, noise_ref,
               p_out, dtr_out, dti_out):
        x = x_ref[...]                                            # [bb, 2*Nc]

        # --- Linear, even/odd outputs pre-merged: P_cat = [Re(P) | Im(P)] ---
        P_cat = jnp.dot(x, wp_ref[...],
                        preferred_element_type=jnp.float32) + bp_ref[...]
        p_out[...] = P_cat                                        # [bb, 2*Nc]

        # --- folded (Linear ∘ scale ∘ Winv):  p_cat = [Re(p) | Im(p)] -------
        # Independent of the P_cat dot above -> both MXU pushes can overlap.
        p_cat = jnp.dot(x, wf_ref[...],
                        preferred_element_type=jnp.float32) + bf_ref[...]
        pr = p_cat[:, :M]                                         # [bb, M]
        pi = p_cat[:, M:]                                         # [bb, M]

        # --- tx = tanh(|p|) * exp(i*angle(p)) = (tanh(|p|)/|p|) * p ---------
        # rsqrt + tanh live on the EUP slot; no VALU divide / sqrt.
        mag2 = pr * pr + pi * pi
        inv = lax.rsqrt(jnp.maximum(mag2, 1e-30))
        mag = mag2 * inv
        t = jnp.tanh(mag)                                         # tanh(|p|)
        gain = t * inv
        tx_r = gain * pr
        tx_i = gain * pi

        # --- Dt = sum(conj(rx) * tx, dim=1) / (Nc*M),  rx = tx + sigma*n ----
        #     = [ sum(|tx|^2) + sigma*sum(n_r*tx_r + n_i*tx_i) ]            (Re)
        #       + i * sigma*sum(n_r*tx_i - n_i*tx_r)                        (Im)
        # with |tx|^2 = tanh(|p|)^2 reused; rx never materialized.
        n = noise_ref[...]                                        # [bb, 2*M]
        nr = n[:, :M]
        ni = n[:, M:]
        dtr_out[...] = jnp.sum(t * t + sig * (nr * tx_r + ni * tx_i),
                               axis=1, keepdims=True) * inv_NcM
        dti_out[...] = jnp.sum(nr * tx_i - ni * tx_r,
                               axis=1, keepdims=True) * (sig * inv_NcM)

    return kernel


def pilots_forward(x, weight, bias, winv_r, winv_i, noise_r, noise_i,
                   *, Nc, M, sigma, max_block_b=512):
    """Glue: fold parameters (even/odd split + scale*Winv), call the kernel."""
    B = x.shape[0]
    scale = M / math.sqrt(Nc)

    # nn.Linear: y = x @ W^T + b ; even output rows -> real(P), odd -> imag(P).
    W_p = jnp.concatenate([jnp.transpose(weight[0::2, :]),
                           jnp.transpose(weight[1::2, :])], axis=1)   # [2Nc, 2Nc]
    b_p = jnp.concatenate([bias[0::2], bias[1::2]]).reshape(1, 2 * Nc)

    # Complex-as-real matrix for p = (P * scale) @ Winv, folded through the
    # Linear:  p_cat = P_cat @ Wc = x @ (W_p @ Wc) + b_p @ Wc.
    Wc = scale * jnp.concatenate(
        [jnp.concatenate([winv_r, winv_i], axis=1),      # acts on Re(P)
         jnp.concatenate([-winv_i, winv_r], axis=1)],    # acts on Im(P)
        axis=0)                                          # [2Nc, 2M]
    W_fold = W_p @ Wc                                    # [2Nc, 2M]
    b_fold = b_p @ Wc                                    # [1, 2M]

    # Single lane-dense noise slab [Re | Im].
    noise = jnp.concatenate([noise_r, noise_i], axis=1)  # [B, 2M]

    # Batch tiling: one block for small B; 512-row (8-aligned) tiles for large
    # B so the pipeline double-buffers HBM<->VMEM and shards across TCs.
    if B <= max_block_b:
        bb = B
    else:
        bb = max(8, (max_block_b // 8) * 8)
    grid = (pl.cdiv(B, bb),)

    P_cat, dt_r, dt_i = pl.pallas_call(
        make_pilots_kernel(Nc, M, sigma),
        out_shape=(
            jax.ShapeDtypeStruct((B, 2 * Nc), jnp.float32),   # [Re(P) | Im(P)]
            jax.ShapeDtypeStruct((B, 1), jnp.float32),        # Re(Dt)
            jax.ShapeDtypeStruct((B, 1), jnp.float32),        # Im(Dt)
        ),
        grid=grid,
        in_specs=[
            pl.BlockSpec((bb, 2 * Nc), lambda i: (i, 0)),     # x
            pl.BlockSpec((2 * Nc, 2 * Nc), lambda i: (0, 0)), # W_p   (resident)
            pl.BlockSpec((1, 2 * Nc), lambda i: (0, 0)),      # b_p   (resident)
            pl.BlockSpec((2 * Nc, 2 * M), lambda i: (0, 0)),  # W_fold(resident)
            pl.BlockSpec((1, 2 * M), lambda i: (0, 0)),       # b_fold(resident)
            pl.BlockSpec((bb, 2 * M), lambda i: (i, 0)),      # noise
        ],
        out_specs=(
            pl.BlockSpec((bb, 2 * Nc), lambda i: (i, 0)),
            pl.BlockSpec((bb, 1), lambda i: (i, 0)),
            pl.BlockSpec((bb, 1), lambda i: (i, 0)),
        ),
        compiler_params=pltpu.CompilerParams(
            dimension_semantics=("parallel",)),
    )(x, W_p, b_p, W_fold, b_fold, noise)

    abs_Dt = jnp.sqrt(dt_r[:, 0] * dt_r[:, 0] + dt_i[:, 0] * dt_i[:, 0])
    P_complex = P_cat[:, :Nc] + 1j * P_cat[:, Nc:]
    return abs_Dt, P_complex


def pilots_reference(x, weight, bias, winv_r, winv_i, noise_r, noise_i,
                     *, Nc, M, sigma):
    """Pure-JAX reference mirroring the PyTorch module (same noise)."""
    P = x @ weight.T + bias
    Pc = P[:, 0::2] + 1j * P[:, 1::2]
    Winv = winv_r + 1j * winv_i
    p = (Pc * (M / math.sqrt(Nc))) @ Winv
    tx = jnp.tanh(jnp.abs(p)) * jnp.exp(1j * jnp.angle(p))
    rx = tx + sigma * (noise_r + 1j * noise_i)
    Dt = jnp.sum(jnp.conj(rx) * tx, axis=1) / (Nc * M)
    return jnp.abs(Dt), Pc


if __name__ == "__main__":
    # Small, deterministic configuration consistent with the module.
    B = 4          # batch
    Nc = 8         # carriers  -> Linear(Nc*2, Nc*2) = Linear(16, 16)
    M = 32         # time-domain samples per OFDM symbol
    Fs = 8000.0
    Rb = 2000.0
    EsNodB = 10.0
    EsNo = 10.0 ** (EsNodB / 10.0)
    sigma = (1.0 * Fs / (EsNo * Rb)) ** 0.5

    key = jax.random.PRNGKey(0)
    k_x, k_w, k_b, k_nr, k_ni = jax.random.split(key, 5)

    # Deterministic "parameters" (synthetic init, PyTorch-Linear-like scale).
    in_f = Nc * 2
    bound = 1.0 / math.sqrt(in_f)
    weight = jax.random.uniform(k_w, (Nc * 2, Nc * 2),
                                minval=-bound, maxval=bound, dtype=jnp.float32)
    bias = jax.random.uniform(k_b, (Nc * 2,),
                              minval=-bound, maxval=bound, dtype=jnp.float32)

    # Deterministic inverse-DFT-style Winv matrix [Nc, M] (complex), split.
    c = jnp.arange(1, Nc + 1, dtype=jnp.float32).reshape(Nc, 1)
    m = jnp.arange(M, dtype=jnp.float32).reshape(1, M)
    phase = 2.0 * math.pi * c * m / M
    winv_r = jnp.cos(phase) / M
    winv_i = jnp.sin(phase) / M

    # Input and complex-Gaussian noise (real/imag each N(0, 1/2), matching
    # torch.randn_like on a complex tensor).
    x = jax.random.normal(k_x, (B, Nc * 2), dtype=jnp.float32)
    noise_r = jax.random.normal(k_nr, (B, M), dtype=jnp.float32) / math.sqrt(2.0)
    noise_i = jax.random.normal(k_ni, (B, M), dtype=jnp.float32) / math.sqrt(2.0)

    abs_Dt, P = pilots_forward(x, weight, bias, winv_r, winv_i,
                               noise_r, noise_i, Nc=Nc, M=M, sigma=sigma)
    jax.block_until_ready((abs_Dt, P))
    assert abs_Dt.shape == (B,) and P.shape == (B, Nc)

    # Correctness check against the pure-JAX reference (same noise).
    abs_Dt_ref, P_ref = pilots_reference(x, weight, bias, winv_r, winv_i,
                                         noise_r, noise_i,
                                         Nc=Nc, M=M, sigma=sigma)
    assert jnp.allclose(abs_Dt, abs_Dt_ref, rtol=1e-3, atol=1e-3)
    assert jnp.allclose(P, P_ref, rtol=1e-3, atol=1e-3)
    print("KERNEL_OK")
</pallas_src>

<mosaic_0001>
module attributes {stable_mosaic.version = 11 : i64} {
  func.func @kernel(%arg0: i32, %arg1: memref<4x16xf32, #tpu.memory_space<vmem>>, %arg2: memref<16x16xf32, #tpu.memory_space<vmem>>, %arg3: memref<1x16xf32, #tpu.memory_space<vmem>>, %arg4: memref<16x64xf32, #tpu.memory_space<vmem>>, %arg5: memref<1x64xf32, #tpu.memory_space<vmem>>, %arg6: memref<4x64xf32, #tpu.memory_space<vmem>>, %arg7: memref<4x16xf32, #tpu.memory_space<vmem>>, %arg8: memref<4x1xf32, #tpu.memory_space<vmem>>, %arg9: memref<4x1xf32, #tpu.memory_space<vmem>>) attributes {dimension_semantics = [#tpu.dimension_semantics<parallel>], iteration_bounds = array<i64: 1>, scalar_prefetch = 0 : i64, scratch_operands = 0 : i64, tpu.core_type = #tpu.core_type<tc>, window_params = [{transform_indices = @transform_0, window_bounds = array<i64: 4, 16>}, {pipeline_mode = #tpu.pipeline_mode<synchronous>, transform_indices = @transform_1, window_bounds = array<i64: 16, 16>}, {pipeline_mode = #tpu.pipeline_mode<synchronous>, transform_indices = @transform_2, window_bounds = array<i64: 1, 16>}, {pipeline_mode = #tpu.pipeline_mode<synchronous>, transform_indices = @transform_3, window_bounds = array<i64: 16, 64>}, {pipeline_mode = #tpu.pipeline_mode<synchronous>, transform_indices = @transform_4, window_bounds = array<i64: 1, 64>}, {transform_indices = @transform_5, window_bounds = array<i64: 4, 64>}, {transform_indices = @transform_6, window_bounds = array<i64: 4, 16>}, {transform_indices = @transform_7, window_bounds = array<i64: 4, 1>}, {transform_indices = @transform_8, window_bounds = array<i64: 4, 1>}]} {
    %c0 = arith.constant 0 : index
    %c0_0 = arith.constant 0 : index
    %0 = vector.load %arg1[%c0, %c0_0] : memref<4x16xf32, #tpu.memory_space<vmem>>, vector<4x16xf32>
    %c0_1 = arith.constant 0 : index
    %c0_2 = arith.constant 0 : index
    %1 = vector.load %arg2[%c0_1, %c0_2] : memref<16x16xf32, #tpu.memory_space<vmem>>, vector<16x16xf32>
    %cst = arith.constant dense<0.000000e+00> : vector<4x16xf32>
    %2 = tpu.matmul %0, %1, %cst {dimension_numbers = #tpu.dot_dimension_numbers<[1], [0], [0], [1], [0, 0, 1, 1], [], []>} : vector<4x16xf32>, vector<16x16xf32>, vector<4x16xf32> -> vector<4x16xf32>
    %c0_3 = arith.constant 0 : index
    %c0_4 = arith.constant 0 : index
    %3 = vector.load %arg3[%c0_3, %c0_4] : memref<1x16xf32, #tpu.memory_space<vmem>>, vector<1x16xf32>
    %4 = vector.broadcast %3 : vector<1x16xf32> to vector<4x16xf32>
    %5 = arith.addf %2, %4 : vector<4x16xf32>
    %c0_5 = arith.constant 0 : index
    %c0_6 = arith.constant 0 : index
    %6 = vector.load %arg7[%c0_5, %c0_6] : memref<4x16xf32, #tpu.memory_space<vmem>>, vector<4x16xf32>
    tpu.vector_store %arg7[%c0_5, %c0_6], %5 {strides = array<i32>} : memref<4x16xf32, #tpu.memory_space<vmem>>, vector<4x16xf32>,
    %c0_7 = arith.constant 0 : index
    %c0_8 = arith.constant 0 : index
    %7 = vector.load %arg4[%c0_7, %c0_8] : memref<16x64xf32, #tpu.memory_space<vmem>>, vector<16x64xf32>
    %cst_9 = arith.constant dense<0.000000e+00> : vector<4x64xf32>
    %8 = tpu.matmul %0, %7, %cst_9 {dimension_numbers = #tpu.dot_dimension_numbers<[1], [0], [0], [1], [0, 0, 1, 1], [], []>} : vector<4x16xf32>, vector<16x64xf32>, vector<4x64xf32> -> vector<4x64xf32>
    %c0_10 = arith.constant 0 : index
    %c0_11 = arith.constant 0 : index
    %9 = vector.load %arg5[%c0_10, %c0_11] : memref<1x64xf32, #tpu.memory_space<vmem>>, vector<1x64xf32>
    %10 = vector.broadcast %9 : vector<1x64xf32> to vector<4x64xf32>
    %11 = arith.addf %8, %10 : vector<4x64xf32>
    %12 = vector.extract_strided_slice %11 {offsets = [0, 0], sizes = [4, 32], strides = [1, 1]} : vector<4x64xf32> to vector<4x32xf32>
    %13 = vector.extract_strided_slice %11 {offsets = [0, 32], sizes = [4, 32], strides = [1, 1]} : vector<4x64xf32> to vector<4x32xf32>
    %14 = arith.mulf %12, %12 : vector<4x32xf32>
    %15 = arith.mulf %13, %13 : vector<4x32xf32>
    %16 = arith.addf %14, %15 : vector<4x32xf32>
    %cst_12 = arith.constant 1.000000e-30 : f32
    %17 = vector.broadcast %cst_12 : f32 to vector<4x32xf32>
    %18 = arith.maximumf %16, %17 : vector<4x32xf32>
    %19 = math.rsqrt %18 : vector<4x32xf32>
    %20 = arith.mulf %16, %19 : vector<4x32xf32>
    %21 = math.tanh %20 : vector<4x32xf32>
    %22 = arith.mulf %21, %19 : vector<4x32xf32>
    %23 = arith.mulf %22, %12 : vector<4x32xf32>
    %24 = arith.mulf %22, %13 : vector<4x32xf32>
    %c0_13 = arith.constant 0 : index
    %c0_14 = arith.constant 0 : index
    %25 = vector.load %arg6[%c0_13, %c0_14] : memref<4x64xf32, #tpu.memory_space<vmem>>, vector<4x64xf32>
    %26 = vector.extract_strided_slice %25 {offsets = [0, 0], sizes = [4, 32], strides = [1, 1]} : vector<4x64xf32> to vector<4x32xf32>
    %27 = vector.extract_strided_slice %25 {offsets = [0, 32], sizes = [4, 32], strides = [1, 1]} : vector<4x64xf32> to vector<4x32xf32>
    %28 = arith.mulf %21, %21 : vector<4x32xf32>
    %29 = arith.mulf %26, %23 : vector<4x32xf32>
    %30 = arith.mulf %27, %24 : vector<4x32xf32>
    %31 = arith.addf %29, %30 : vector<4x32xf32>
    %cst_15 = arith.constant 0.632455527 : f32
    %32 = vector.broadcast %cst_15 : f32 to vector<4x32xf32>
    %33 = arith.mulf %32, %31 : vector<4x32xf32>
    %34 = arith.addf %28, %33 : vector<4x32xf32>
    %cst_16 = arith.constant dense<0.000000e+00> : vector<4xf32>
    %35 = vector.multi_reduction <add>, %34, %cst_16 [1] : vector<4x32xf32> to vector<4xf32>
    %36 = vector.shape_cast %35 : vector<4xf32> to vector<4x1xf32>
    %cst_17 = arith.constant 3.906250e-03 : f32
    %37 = vector.broadcast %cst_17 : f32 to vector<4x1xf32>
    %38 = arith.mulf %36, %37 : vector<4x1xf32>
    %c0_18 = arith.constant 0 : index
    %c0_19 = arith.constant 0 : index
    %39 = vector.load %arg8[%c0_18, %c0_19] : memref<4x1xf32, #tpu.memory_space<vmem>>, vector<4x1xf32>
    tpu.vector_store %arg8[%c0_18, %c0_19], %38 {strides = array<i32>} : memref<4x1xf32, #tpu.memory_space<vmem>>, vector<4x1xf32>,
    %40 = arith.mulf %26, %24 : vector<4x32xf32>
    %41 = arith.mulf %27, %23 : vector<4x32xf32>
    %42 = arith.subf %40, %41 : vector<4x32xf32>
    %cst_20 = arith.constant dense<0.000000e+00> : vector<4xf32>
    %43 = vector.multi_reduction <add>, %42, %cst_20 [1] : vector<4x32xf32> to vector<4xf32>
    %44 = vector.shape_cast %43 : vector<4xf32> to vector<4x1xf32>
    %cst_21 = arith.constant 0.00247052941 : f32
    %45 = vector.broadcast %cst_21 : f32 to vector<4x1xf32>
    %46 = arith.mulf %44, %45 : vector<4x1xf32>
    %c0_22 = arith.constant 0 : index
    %c0_23 = arith.constant 0 : index
    %47 = vector.load %arg9[%c0_22, %c0_23] : memref<4x1xf32, #tpu.memory_space<vmem>>, vector<4x1xf32>
    tpu.vector_store %arg9[%c0_22, %c0_23], %46 {strides = array<i32>} : memref<4x1xf32, #tpu.memory_space<vmem>>, vector<4x1xf32>,
    return
  }
  func.func @transform_0(%arg0: i32) -> (i32, i32) {
    %c0_i32 = arith.constant 0 : i32
    %c0_i32_0 = arith.constant 0 : i32
    return %arg0, %c0_i32 : i32, i32
  }
  func.func @transform_1(%arg0: i32) -> (i32, i32) {
    %c0_i32 = arith.constant 0 : i32
    %c0_i32_0 = arith.constant 0 : i32
    %c0_i32_1 = arith.constant 0 : i32
    return %c0_i32, %c0_i32_0 : i32, i32
  }
  func.func @transform_2(%arg0: i32) -> (i32, i32) {
    %c0_i32 = arith.constant 0 : i32
    %c0_i32_0 = arith.constant 0 : i32
    %c0_i32_1 = arith.constant 0 : i32
    return %c0_i32, %c0_i32_0 : i32, i32
  }
  func.func @transform_3(%arg0: i32) -> (i32, i32) {
    %c0_i32 = arith.constant 0 : i32
    %c0_i32_0 = arith.constant 0 : i32
    %c0_i32_1 = arith.constant 0 : i32
    return %c0_i32, %c0_i32_0 : i32, i32
  }
  func.func @transform_4(%arg0: i32) -> (i32, i32) {
    %c0_i32 = arith.constant 0 : i32
    %c0_i32_0 = arith.constant 0 : i32
    %c0_i32_1 = arith.constant 0 : i32
    return %c0_i32, %c0_i32_0 : i32, i32
  }
  func.func @transform_5(%arg0: i32) -> (i32, i32) {
    %c0_i32 = arith.constant 0 : i32
    %c0_i32_0 = arith.constant 0 : i32
    return %arg0, %c0_i32 : i32, i32
  }
  func.func @transform_6(%arg0: i32) -> (i32, i32) {
    %c0_i32 = arith.constant 0 : i32
    %c0_i32_0 = arith.constant 0 : i32
    return %arg0, %c0_i32 : i32, i32
  }
  func.func @transform_7(%arg0: i32) -> (i32, i32) {
    %c0_i32 = arith.constant 0 : i32
    %c0_i32_0 = arith.constant 0 : i32
    return %arg0, %c0_i32 : i32, i32
  }
  func.func @transform_8(%arg0: i32) -> (i32, i32) {
    %c0_i32 = arith.constant 0 : i32
    %c0_i32_0 = arith.constant 0 : i32
    return %arg0, %c0_i32 : i32, i32
  }
}

</mosaic_0001>

<llo_original>
// kernel: tpu_custom_call.1
$region0: #{tpu_custom_call.1}
  #allocation0 [shape = 'u32[]', space=smem, size = 0x4, offset = 0x4, fixed_abs, tag = 'smem constant byte address 0x4 - core index']
  #allocation1 [shape = 'u32[144,128]{1,0:T(1,128)}', space=vmem, size = 0x12000, scoped, tag = 'internal scratch']
  %s0 = inlined_call_operand.hbm [shape: f32[4,16], index: 0, kind: input, shape index: {}]
  %s1 = inlined_call_operand.hbm [shape: f32[16,16], index: 1, kind: input, shape index: {}]
  %s2 = inlined_call_operand.vmem [shape: f32[1,16], index: 2, kind: input, shape index: {}]
  %s3 = inlined_call_operand.hbm [shape: f32[16,64], index: 3, kind: input, shape index: {}]
  %s4 = inlined_call_operand.vmem [shape: f32[1,64], index: 4, kind: input, shape index: {}]
  %s5 = inlined_call_operand.vmem [shape: f32[4,64], index: 5, kind: input, shape index: {}]
  %s6 = inlined_call_operand.hbm [shape: f32[4,16], index: 6, kind: output, shape index: {0}]
  %s7 = inlined_call_operand.vmem [shape: f32[4,1], index: 7, kind: output, shape index: {1}]
  %s8 = inlined_call_operand.vmem [shape: f32[4,1], index: 8, kind: output, shape index: {2}]
  %9 = xla_tuple %s6, %s7, %s8
  %s10 = sld [smem:[#allocation0]]
  $region62: #{tpu_custom_call.1} parent=0
    _
  %s12 = ssub.s32 1, %s10
  %s13 = scalar_select 0, %s12, %s10
  $region1: #{tpu_custom_call.1} parent=0
    #allocation2 [shape = 'u8[2048]{0}', space=vmem, size = 0x800, scoped, tag = 'input window, operand 0, single buffered']
    #allocation3 [shape = 's32[1]{0}', space=sflag, size = 0x4, scoped, tag = 'scoped memory for tpu_custom_call.1']
    #allocation4 [shape = 's32[1]{0}', space=sflag, size = 0x4, scoped, tag = 'scoped memory for tpu_custom_call.1']
    #allocation5 [shape = 'u8[8192]{0}', space=vmem, size = 0x2000, scoped, tag = 'input window, operand 1, single buffered']
    #allocation6 [shape = 's32[1]{0}', space=sflag, size = 0x4, scoped, tag = 'scoped memory for tpu_custom_call.1']
    #allocation7 [shape = 'u8[8192]{0}', space=vmem, size = 0x2000, scoped, tag = 'input window, operand 3, single buffered']
    #allocation8 [shape = 'u8[2048]{0}', space=vmem, size = 0x800, scoped, tag = 'output window, operand 0, single buffered']
    %14 = vsyncpa [#allocation3], 0
    %15 = vsyncpa [#allocation6], 0
    %16 = vsyncpa [#allocation4], 0
    // Predicated region
    $region2: #{tpu_custom_call.1} parent=1 // pred_check
      _
    $region3: #{tpu_custom_call.1} parent=1 // pred_check_branch
      %18 = sbr.rel (0) target = $region5
    $region4: #{tpu_custom_call.1} parent=1 // pred_region
      %s20 = ssub.s32 64, 64
      %21 = vsyncadd [#allocation3], %s20
      %s23 = sshll.u32 [#allocation2], 4
      %s24 = int_to_ptr.vmem [resolvable:$true] %s23
      %26 = dma.hbm_to_vmem [thread:$0]  %s0, 64, %s24, [#allocation3]
    $region5: #{tpu_custom_call.1} parent=1 // pred_fallthru
      _
    // Predicated region
    $region6: #{tpu_custom_call.1} parent=1 // pred_check
      _
    $region7: #{tpu_custom_call.1} parent=1 // pred_check_branch
      %28 = sbr.rel (0) target = $region9
    $region8: #{tpu_custom_call.1} parent=1 // pred_region
      %s30 = ssub.s32 256, 256
      %31 = vsyncadd [#allocation6], %s30
      %s32 = sshll.u32 [#allocation5], 4
      %s33 = int_to_ptr.vmem [resolvable:$true] %s32
      %38 = dma.hbm_to_vmem [thread:$0]  %s1, 256, %s33, [#allocation6], 128, 128, 8
    $region9: #{tpu_custom_call.1} parent=1 // pred_fallthru
      _
    // Predicated region
    $region10: #{tpu_custom_call.1} parent=1 // pred_check
      _
    $region11: #{tpu_custom_call.1} parent=1 // pred_check_branch
      %40 = sbr.rel (0) target = $region13
    $region12: #{tpu_custom_call.1} parent=1 // pred_region
      _
    $region13: #{tpu_custom_call.1} parent=1 // pred_fallthru
      _
    // Predicated region
    $region14: #{tpu_custom_call.1} parent=1 // pred_check
      _
    $region15: #{tpu_custom_call.1} parent=1 // pred_check_branch
      %42 = sbr.rel (0) target = $region17
    $region16: #{tpu_custom_call.1} parent=1 // pred_region
      %s44 = ssub.s32 256, 256
      %45 = vsyncadd [#allocation6], %s44
      %s46 = sshll.u32 [#allocation7], 4
      %s47 = int_to_ptr.vmem [resolvable:$true] %s46
      %52 = dma.hbm_to_vmem [thread:$0]  %s3, 256, %s47, [#allocation6], 128, 128, 8
    $region17: #{tpu_custom_call.1} parent=1 // pred_fallthru
      _
    // Predicated region
    $region18: #{tpu_custom_call.1} parent=1 // pred_check
      _
    $region19: #{tpu_custom_call.1} parent=1 // pred_check_branch
      %54 = sbr.rel (0) target = $region21
    $region20: #{tpu_custom_call.1} parent=1 // pred_region
      _
    $region21: #{tpu_custom_call.1} parent=1 // pred_fallthru
      _
    // Predicated region
    $region22: #{tpu_custom_call.1} parent=1 // pred_check
      _
    $region23: #{tpu_custom_call.1} parent=1 // pred_check_branch
      %56 = sbr.rel (0) target = $region25
    $region24: #{tpu_custom_call.1} parent=1 // pred_region
      _
    $region25: #{tpu_custom_call.1} parent=1 // pred_fallthru
      _
    // Predicated region
    $region26: #{tpu_custom_call.1} parent=1 // pred_check
      _
    $region27: #{tpu_custom_call.1} parent=1 // pred_check_branch
      %58 = sbr.rel (0) target = $region29
    $region28: #{tpu_custom_call.1} parent=1 // pred_region
      %59 = dma.done [#allocation3], 64
    $region29: #{tpu_custom_call.1} parent=1 // pred_fallthru
      _
    // Predicated region
    $region30: #{tpu_custom_call.1} parent=1 // pred_check
      _
    $region31: #{tpu_custom_call.1} parent=1 // pred_check_branch
      %61 = sbr.rel (0) target = $region33
    $region32: #{tpu_custom_call.1} parent=1 // pred_region
      %62 = dma.done [#allocation6], 256
    $region33: #{tpu_custom_call.1} parent=1 // pred_fallthru
      _
    // Predicated region
    $region34: #{tpu_custom_call.1} parent=1 // pred_check
      _
    $region35: #{tpu_custom_call.1} parent=1 // pred_check_branch
      %64 = sbr.rel (0) target = $region37
    $region36: #{tpu_custom_call.1} parent=1 // pred_region
      %65 = dma.done [#allocation6], 256
    $region37: #{tpu_custom_call.1} parent=1 // pred_fallthru
      _
    %v66 = vld [vmem:[#allocation2] sm:$0xf]
    %v67 = vld [vmem:[#allocation5] sm:$0xff]
    %v68 = vld [vmem:[#allocation5 + $0x8] sm:$0xff]
    %v69 = vld [vmem:[%s2] sm:$0x1]
    %v71 = vlaneseq
    %v72 = vshrl.u32 %v71, 7
    %v73 = vsub.s32 0, %v72
    %v74 = vrot.slane %v69, %v73
    %vm76 = vcmask 130048
    %v78 = vsel %vm76, %v66, 0
    %80 = vmatprep.subr.mxu0 0.0
    %81 = vmatpush1.msra.mxu0 %v67
    %82 = vmatprep.subr.mxu0 0.0
    %83 = vmatpush1.msra.mxu0 %v68
    %84 = vmatprep.subr.mxu0 0.0
    %85 = vmatpush1.msra.mxu0 0.0
    %86 = vmatprep.subr.mxu0 0.0
    %87 = vmatpush1.msra.mxu0 0.0
    %88 = vmatprep.subr.mxu0 0.0
    %89 = vmatpush1.msra.mxu0 0.0
    %90 = vmatprep.subr.mxu0 0.0
    %91 = vmatpush1.msra.mxu0 0.0
    %92 = vmatprep.subr.mxu0 0.0
    %93 = vmatpush1.msra.mxu0 0.0
    %94 = vmatprep.subr.mxu0 0.0
    %95 = vmatpush1.msra.mxu0 0.0
    %96 = vmatprep.subr.mxu0 0.0
    %97 = vmatpush1.msra.mxu0 0.0
    %98 = vmatprep.subr.mxu0 0.0
    %99 = vmatpush1.msra.mxu0 0.0
    %100 = vmatprep.subr.mxu0 0.0
    %101 = vmatpush1.msra.mxu0 0.0
    %102 = vmatprep.subr.mxu0 0.0
    %103 = vmatpush1.msra.mxu0 0.0
    %104 = vmatprep.subr.mxu0 0.0
    %105 = vmatpush1.msra.mxu0 0.0
    %106 = vmatprep.subr.mxu0 0.0
    %107 = vmatpush1.msra.mxu0 0.0
    %108 = vmatprep.subr.mxu0 0.0
    %109 = vmatpush1.msra.mxu0 0.0
    %110 = vmatprep.subr.mxu0 0.0
    %111 = vmatpush1.msra.mxu0 0.0
    %112 = vmatprep.subr.mxu0 0.0
    %113 = vmatpush1.msra.mxu0 0.0
    %114 = vmatprep.subr.mxu0 0.0
    %115 = vmatpush1.msra.mxu0 0.0
    %116 = vmatprep.subr.mxu0 0.0
    %117 = vmatpush1.msra.mxu0 0.0
    %118 = vmatprep.subr.mxu0 0.0
    %119 = vmatpush1.msra.mxu0 0.0
    %120 = vmatprep.subr.mxu0 0.0
    %121 = vmatpush1.msra.mxu0 0.0
    %122 = vmatprep.subr.mxu0 0.0
    %123 = vmatpush1.msra.mxu0 0.0
    %124 = vmatprep.subr.mxu0 0.0
    %125 = vmatpush1.msra.mxu0 0.0
    %126 = vmatprep.subr.mxu0 0.0
    %127 = vmatpush1.msra.mxu0 0.0
    %128 = vmatprep.subr.mxu0 0.0
    %129 = vmatpush1.msra.mxu0 0.0
    %130 = vmatprep.subr.mxu0 0.0
    %131 = vmatpush1.msra.mxu0 0.0
    %132 = vmatprep.subr.mxu0 0.0
    %133 = vmatpush1.msra.mxu0 0.0
    %134 = vmatprep.subr.mxu0 0.0
    %135 = vmatpush1.msra.mxu0 0.0
    %136 = vmatprep.subr.mxu0 0.0
    %137 = vmatpush1.msra.mxu0 0.0
    %138 = vmatprep.subr.mxu0 0.0
    %139 = vmatpush1.msra.mxu0 0.0
    %140 = vmatprep.subr.mxu0 0.0
    %141 = vmatpush1.msra.mxu0 0.0
    %142 = vmatprep.subr.mxu0 0.0
    %143 = vmatpush1.msra.mxu0 0.0
    %144 = vmatprep.mubr.f32.mxu0 0.0
    %145 = vmatmul.mubr.f32.gmra.mrb[0].mxu0 %v78
    %v146 = vpop.f32.mrb[0].mxu0
    %v147 = vadd.f32 %v74, %v146
    %v148 = vpop.f32.mrb[0].mxu0
    %149 = vdwg.mxu0
    %vm150 = vcmask 125952
    %151 = vst.msk [vmem:[#allocation8] sm:$0xf] %vm150, %v147
    %v152 = vld [vmem:[#allocation7] sm:$0xff]
    %v153 = vld [vmem:[#allocation7 + $0x8] sm:$0xff]
    %v154 = vld [vmem:[%s4] sm:$0x1]
    %v156 = vlaneseq
    %v157 = vshrl.u32 %v156, 7
    %v158 = vsub.s32 0, %v157
    %v159 = vrot.slane %v154, %v158
    %161 = vmatprep.subr.mxu0 0.0
    %162 = vmatpush1.msra.mxu0 %v152
    %163 = vmatprep.subr.mxu0 0.0
    %164 = vmatpush1.msra.mxu0 %v153
    %165 = vmatprep.subr.mxu0 0.0
    %166 = vmatpush1.msra.mxu0 0.0
    %167 = vmatprep.subr.mxu0 0.0
    %168 = vmatpush1.msra.mxu0 0.0
    %169 = vmatprep.subr.mxu0 0.0
    %170 = vmatpush1.msra.mxu0 0.0
    %171 = vmatprep.subr.mxu0 0.0
    %172 = vmatpush1.msra.mxu0 0.0
    %173 = vmatprep.subr.mxu0 0.0
    %174 = vmatpush1.msra.mxu0 0.0
    %175 = vmatprep.subr.mxu0 0.0
    %176 = vmatpush1.msra.mxu0 0.0
    %177 = vmatprep.subr.mxu0 0.0
    %178 = vmatpush1.msra.mxu0 0.0
    %179 = vmatprep.subr.mxu0 0.0
    %180 = vmatpush1.msra.mxu0 0.0
    %181 = vmatprep.subr.mxu0 0.0
    %182 = vmatpush1.msra.mxu0 0.0
    %183 = vmatprep.subr.mxu0 0.0
    %184 = vmatpush1.msra.mxu0 0.0
    %185 = vmatprep.subr.mxu0 0.0
    %186 = vmatpush1.msra.mxu0 0.0
    %187 = vmatprep.subr.mxu0 0.0
    %188 = vmatpush1.msra.mxu0 0.0
    %189 = vmatprep.subr.mxu0 0.0
    %190 = vmatpush1.msra.mxu0 0.0
    %191 = vmatprep.subr.mxu0 0.0
    %192 = vmatpush1.msra.mxu0 0.0
    %193 = vmatprep.subr.mxu0 0.0
    %194 = vmatpush1.msra.mxu0 0.0
    %195 = vmatprep.subr.mxu0 0.0
    %196 = vmatpush1.msra.mxu0 0.0
    %197 = vmatprep.subr.mxu0 0.0
    %198 = vmatpush1.msra.mxu0 0.0
    %199 = vmatprep.subr.mxu0 0.0
    %200 = vmatpush1.msra.mxu0 0.0
    %201 = vmatprep.subr.mxu0 0.0
    %202 = vmatpush1.msra.mxu0 0.0
    %203 = vmatprep.subr.mxu0 0.0
    %204 = vmatpush1.msra.mxu0 0.0
    %205 = vmatprep.subr.mxu0 0.0
    %206 = vmatpush1.msra.mxu0 0.0
    %207 = vmatprep.subr.mxu0 0.0
    %208 = vmatpush1.msra.mxu0 0.0
    %209 = vmatprep.subr.mxu0 0.0
    %210 = vmatpush1.msra.mxu0 0.0
    %211 = vmatprep.subr.mxu0 0.0
    %212 = vmatpush1.msra.mxu0 0.0
    %213 = vmatprep.subr.mxu0 0.0
    %214 = vmatpush1.msra.mxu0 0.0
    %215 = vmatprep.subr.mxu0 0.0
    %216 = vmatpush1.msra.mxu0 0.0
    %217 = vmatprep.subr.mxu0 0.0
    %218 = vmatpush1.msra.mxu0 0.0
    %219 = vmatprep.subr.mxu0 0.0
    %220 = vmatpush1.msra.mxu0 0.0
    %221 = vmatprep.subr.mxu0 0.0
    %222 = vmatpush1.msra.mxu0 0.0
    %223 = vmatprep.subr.mxu0 0.0
    %224 = vmatpush1.msra.mxu0 0.0
    %225 = vmatprep.mubr.f32.mxu0 0.0
    %226 = vmatmul.mubr.f32.gmra.mrb[0].mxu0 %v78
    %v227 = vpop.f32.mrb[0].mxu0
    %v228 = vadd.f32 %v159, %v227
    %v229 = vpop.f32.mrb[0].mxu0
    %230 = vdwg.mxu0
    %v231 = vmul.f32 %v228, %v228
    %233 = vrot.lane.b32.xlu0 %v231, 96
    %v234 = vpop.permute.xlu0 %233
    %v236 = vadd.f32 %v231, %v234
    %v237 = vmax.f32 %v236, 1e-30
    %v238 = vrsqrt.pop %v237
    %v239 = vmul.f32 %v236, %v238
    %v240 = vtanh.pop %v239
    %v241 = vmul.f32 %v240, %v238
    %v242 = vmul.f32 %v241, %v228
    %244 = vrot.lane.b32.xlu0 %v228, 96
    %v245 = vpop.permute.xlu0 %244
    %v247 = vmul.f32 %v241, %v245
    %v248 = vld [vmem:[%s5] sm:$0xf]
    %v249 = vmul.f32 %v240, %v240
    %v250 = vmul.f32 %v248, %v242
    %252 = vrot.lane.b32.xlu0 %v247, 32
    %v253 = vpop.permute.xlu0 %252
    %v255 = vmul.f32 %v248, %v253
    %257 = vrot.lane.b32.xlu0 %v255, 96
    %v258 = vpop.permute.xlu0 %257
    %v260 = vadd.f32 %v250, %v258
    %v261 = vmul.f32 %v260, 0.6324555
    %v262 = vadd.f32 %v249, %v261
    %vm263 = vcmask 257024
    %v264 = vsel %vm263, %v262, 0.0
    %265 = vadd.xlane.f32.xlu0 %v264
    %v266 = vpop.xlane.xlu0 %265
    %v267 = vmul.f32 %v266, 0.00390625
    %vm268 = vcmask 3072
    %269 = vst.msk [vmem:[%s7] sm:$0xf] %vm268, %v267
    %v270 = vmul.f32 %v248, %v247
    %272 = vrot.lane.b32.xlu0 %v242, 32
    %v273 = vpop.permute.xlu0 %272
    %v275 = vmul.f32 %v248, %v273
    %277 = vrot.lane.b32.xlu0 %v275, 96
    %v278 = vpop.permute.xlu0 %277
    %v280 = vsub.f32 %v270, %v278
    %v281 = vsel %vm263, %v280, 0.0
    %282 = vadd.xlane.f32.xlu0 %v281
    %v283 = vpop.xlane.xlu0 %282
    %v284 = vmul.f32 %v283, 0.0024705294
    %285 = vst.msk [vmem:[%s8] sm:$0xf] %vm268, %v284
    // Predicated region
    $region38: #{tpu_custom_call.1} parent=1 // pred_check
      _
    $region39: #{tpu_custom_call.1} parent=1 // pred_check_branch
      %287 = sbr.rel (0) target = $region41
    $region40: #{tpu_custom_call.1} parent=1 // pred_region
      %s289 = ssub.s32 64, 64
      %290 = vsyncadd [#allocation4], %s289
      %s292 = sshll.u32 [#allocation8], 4
      %s293 = int_to_ptr.vmem [resolvable:$true] %s292
      %295 = dma.vmem_to_hbm [thread:$0]  %s293, 64, %s6, [#allocation4]
    $region41: #{tpu_custom_call.1} parent=1 // pred_fallthru
      _
    // Predicated region
    $region42: #{tpu_custom_call.1} parent=1 // pred_check
      _
    $region43: #{tpu_custom_call.1} parent=1 // pred_check_branch
      %297 = sbr.rel (0) target = $region45
    $region44: #{tpu_custom_call.1} parent=1 // pred_region
      _
    $region45: #{tpu_custom_call.1} parent=1 // pred_fallthru
      _
    // Predicated region
    $region46: #{tpu_custom_call.1} parent=1 // pred_check
      _
    $region47: #{tpu_custom_call.1} parent=1 // pred_check_branch
      %299 = sbr.rel (0) target = $region49
    $region48: #{tpu_custom_call.1} parent=1 // pred_region
      _
    $region49: #{tpu_custom_call.1} parent=1 // pred_fallthru
      _
    // Predicated region
    $region50: #{tpu_custom_call.1} parent=1 // pred_check
      _
    $region51: #{tpu_custom_call.1} parent=1 // pred_check_branch
      %301 = sbr.rel (0) target = $region53
    $region52: #{tpu_custom_call.1} parent=1 // pred_region
      %302 = dma.done [#allocation4], 64
    $region53: #{tpu_custom_call.1} parent=1 // pred_fallthru
      _
    // Predicated region
    $region54: #{tpu_custom_call.1} parent=1 // pred_check
      _
    $region55: #{tpu_custom_call.1} parent=1 // pred_check_branch
      %304 = sbr.rel (0) target = $region57
    $region56: #{tpu_custom_call.1} parent=1 // pred_region
      _
    $region57: #{tpu_custom_call.1} parent=1 // pred_fallthru
      _
    // Predicated region
    $region58: #{tpu_custom_call.1} parent=1 // pred_check
      _
    $region59: #{tpu_custom_call.1} parent=1 // pred_check_branch
      %306 = sbr.rel (0) target = $region61
    $region60: #{tpu_custom_call.1} parent=1 // pred_region
      _
    $region61: #{tpu_custom_call.1} parent=1 // pred_fallthru
      _
    %307 = vsyncpa [#allocation3], 1
    %308 = vsyncpa [#allocation6], 1
    %309 = vsyncpa [#allocation4], 1

</llo_original>
